<compile_context>
chip_gen: v6e
topology: v6e:2x2x1
jax: 0.10.0
libtpu: 0.0.40
codegen_flags: <defaults>
</compile_context>

<pallas_src>
import jax
import jax.numpy as jnp
from jax.experimental import pallas as pl
from jax.experimental.pallas import tpu as pltpu


_LANE = 128
_MIB = 1024 * 1024


def _round_up(n, m):
    return ((n + m - 1) // m) * m


def _vmem_capacity_bytes():
    """Physical VMEM per TensorCore; conservative fallback if the query fails."""
    try:
        cap = getattr(pltpu.get_tpu_info(), "vmem_capacity_bytes", None)
        if cap:
            return int(cap)
    except Exception:
        pass
    return 64 * _MIB  # v7x per-core size: safe lower bound on all generations


def _make_kernel(*, tile_k, d_total, mask_k):
    def kernel(c_ref, x_ref, w_ref, o_ref):
        # c_ref : (1, 1)            f32 SMEM -- bias + meta_param folded together
        # x_ref : (TILE_B, TILE_K)  VMEM     -- streamed, double-buffered batch tile
        # w_ref : (1, TILE_K)       VMEM     -- tiny, fetched per reduction step
        # o_ref : (1, TILE_B)       f32 VMEM -- lane-dense accumulator, resident
        #                                       across the reduction grid axis
        k = pl.program_id(1)

        @pl.when(k == 0)
        def _init():
            # Start the accumulator at (bias + meta_param).
            o_ref[...] = jnp.full(o_ref.shape, c_ref[0, 0], o_ref.dtype)

        x = x_ref[...].astype(jnp.float32)
        w = w_ref[...].astype(jnp.float32)
        prod = x * w                                    # VPU broadcast multiply
        if mask_k:
            # Ragged reduction tail: zero out-of-range columns (also kills any
            # NaN/Inf garbage read past the end of x / w).
            d = jax.lax.broadcasted_iota(jnp.int32, prod.shape, 1) + k * tile_k
            prod = jnp.where(d < d_total, prod, 0.0)
        # Lane reduce (XLU) -> per-row scalars, accumulated into the lane-dense
        # output slab.  TODO(synk): verify in the bundle dump that this relayout
        # stays hidden under the x DMA on v7x (3.2 TB/s shortens the window).
        o_ref[...] += jnp.sum(prod, axis=-1)[None, :]

    return kernel


def net_forward(x, weight, bias, meta_param):
    """Forward pass of Net: fc(x) + meta_param.

    x: (B, D) float array (f32 or bf16); weight: (1, D) (PyTorch nn.Linear
    layout); bias: (1,); meta_param: scalar.  Returns (B, 1) float32.
    """
    x = jnp.asarray(x)
    if x.dtype not in (jnp.float32, jnp.bfloat16):
        x = x.astype(jnp.float32)
    B, D = x.shape
    x_item = x.dtype.itemsize

    w = jnp.asarray(weight, x.dtype).reshape(1, D)
    c = (jnp.asarray(bias, jnp.float32).reshape(())
         + jnp.asarray(meta_param, jnp.float32).reshape(())).reshape(1, 1)

    # ---- generation-aware VMEM budget --------------------------------------
    # ~3/4 of physical VMEM (v7x: 64 MiB -> 48 MiB, v5e/v6e: 128 MiB -> 96 MiB)
    # minus headroom for weight buffers / Mosaic internal scratch.
    vmem_limit = min((_vmem_capacity_bytes() * 3) // 4, 112 * _MIB)
    avail = vmem_limit - 4 * _MIB

    # Per-row VMEM bytes of one batch row at reduction width `tk`, counting the
    # lane padding (rows padded to >=128 lanes), BOTH double-buffered x tiles,
    # the full-tile f32 product temporary materialized by the VPU reduce, and
    # the (sublane-padded) share of the double-buffered output slab.
    # TODO(synk): for D << 128, fold 128//D logical rows into the lane axis via
    # a free wrapper reshape + segmented lane reduce to reclaim the lane padding.
    def _per_row(tk):
        width = max(_round_up(tk, _LANE), _LANE)
        return width * (2 * x_item + 4) + 2 * 8 * 4

    def _rows_budget(tk):
        return max(0, (avail // _per_row(tk)) // _LANE * _LANE)

    # ---- reduction (D) tiling -----------------------------------------------
    tile_k = D
    rows_cap = _rows_budget(tile_k)
    if rows_cap < _LANE:
        # Full-D rows do not fit even at 128 rows: split the reduction across a
        # trailing "arbitrary" grid axis, accumulating in the output block.
        target_rows = 512
        tile_k = (avail // target_rows - 2 * 8 * 4) // (2 * x_item + 4)
        tile_k = max(_LANE, min((tile_k // _LANE) * _LANE, _round_up(D, _LANE)))
        rows_cap = max(_LANE, _rows_budget(tile_k))
    grid_k = pl.cdiv(D, tile_k)
    mask_k = (D % tile_k) != 0

    # ---- batch (B) tiling ----------------------------------------------------
    b_round = _round_up(B, _LANE)
    tile_b = min(rows_cap, b_round)
    if B >= 2 * _LANE and tile_b >= b_round:
        # Keep >= 2 batch blocks so both v7x TensorCores get work.
        tile_b = _round_up(pl.cdiv(B, 2), _LANE)
    if B <= tile_b:
        tile_b = B          # exact single block: no padding, no ragged tile
    grid_b = pl.cdiv(B, tile_b)
    b_pad = grid_b * tile_b  # only the (tiny) output is ever padded
    # NOTE: tiles are >=1 MiB by construction, so the default pipeline depth of
    # 2 suffices; pl.Buffered(3) would only help for sub-2 MiB tiles on v7x.

    kernel = _make_kernel(tile_k=tile_k, d_total=D, mask_k=mask_k)

    out_row = pl.pallas_call(
        kernel,
        out_shape=jax.ShapeDtypeStruct((1, b_pad), jnp.float32),
        grid=(grid_b, grid_k),
        in_specs=[
            pl.BlockSpec(memory_space=pltpu.MemorySpace.SMEM),      # c (bias+meta)
            pl.BlockSpec((tile_b, tile_k), lambda i, k: (i, k)),    # x tile stream
            pl.BlockSpec((1, tile_k), lambda i, k: (0, k)),         # weight
        ],
        out_specs=pl.BlockSpec((1, tile_b), lambda i, k: (0, i)),   # lane-dense acc
        compiler_params=pltpu.CompilerParams(
            dimension_semantics=("parallel", "arbitrary"),
            vmem_limit_bytes=vmem_limit,
        ),
    )(c, x, w)

    return out_row[0, :B].reshape(B, 1)


if __name__ == "__main__":
    key = jax.random.PRNGKey(0)
    kx, kw, kb, km = jax.random.split(key, 4)

    batch, dim = 8, 32

    # PyTorch nn.Linear init: U(-1/sqrt(dim), 1/sqrt(dim))
    bound = 1.0 / float(dim) ** 0.5
    weight = jax.random.uniform(kw, (1, dim), jnp.float32, -bound, bound)
    bias = jax.random.uniform(kb, (1,), jnp.float32, -bound, bound)

    x = jax.random.normal(kx, (batch, dim), jnp.float32)
    meta_param = jax.random.normal(km, (), jnp.float32)

    out = jax.block_until_ready(net_forward(x, weight, bias, meta_param))

    # Reference check in plain JAX
    ref = x @ weight.T + bias + meta_param
    assert out.shape == (batch, 1)
    assert jnp.allclose(out, ref, atol=1e-5, rtol=1e-5), "mismatch vs reference"

    print("KERNEL_OK")
</pallas_src>

<mosaic_0001>
module attributes {stable_mosaic.version = 11 : i64} {
  func.func @kernel(%arg0: i32, %arg1: i32, %arg2: memref<1x1xf32, #tpu.memory_space<smem>>, %arg3: memref<8x32xf32, #tpu.memory_space<vmem>>, %arg4: memref<1x32xf32, #tpu.memory_space<vmem>>, %arg5: memref<1x8xf32, #tpu.memory_space<vmem>>) attributes {dimension_semantics = [#tpu.dimension_semantics<parallel>, #tpu.dimension_semantics<arbitrary>], iteration_bounds = array<i64: 1, 1>, scalar_prefetch = 0 : i64, scratch_operands = 0 : i64, tpu.core_type = #tpu.core_type<tc>, window_params = [{transform_indices = @transform_0, window_bounds = array<i64: 1, 1>}, {transform_indices = @transform_1, window_bounds = array<i64: 8, 32>}, {transform_indices = @transform_2, window_bounds = array<i64: 1, 32>}, {transform_indices = @transform_3, window_bounds = array<i64: 1, 8>}]} {
    %c0_i32 = arith.constant 0 : i32
    %0 = arith.cmpi eq, %arg1, %c0_i32 : i32
    %1 = arith.extui %0 : i1 to i32
    %c0_i32_0 = arith.constant 0 : i32
    %2 = arith.cmpi ne, %1, %c0_i32_0 : i32
    scf.if %2 {
      %c0_8 = arith.constant 0 : index
      %c0_9 = arith.constant 0 : index
      %12 = memref.load %arg2[%c0_8, %c0_9] : memref<1x1xf32, #tpu.memory_space<smem>>
      %13 = vector.broadcast %12 : f32 to vector<1x8xf32>
      %c0_10 = arith.constant 0 : index
      %c0_11 = arith.constant 0 : index
      %14 = vector.load %arg5[%c0_10, %c0_11] : memref<1x8xf32, #tpu.memory_space<vmem>>, vector<1x8xf32>
      tpu.vector_store %arg5[%c0_10, %c0_11], %13 {strides = array<i32>} : memref<1x8xf32, #tpu.memory_space<vmem>>, vector<1x8xf32>,
    } else {
    }
    %c0 = arith.constant 0 : index
    %c0_1 = arith.constant 0 : index
    %3 = vector.load %arg3[%c0, %c0_1] : memref<8x32xf32, #tpu.memory_space<vmem>>, vector<8x32xf32>
    %c0_2 = arith.constant 0 : index
    %c0_3 = arith.constant 0 : index
    %4 = vector.load %arg4[%c0_2, %c0_3] : memref<1x32xf32, #tpu.memory_space<vmem>>, vector<1x32xf32>
    %5 = vector.broadcast %4 : vector<1x32xf32> to vector<8x32xf32>
    %6 = arith.mulf %3, %5 : vector<8x32xf32>
    %c0_4 = arith.constant 0 : index
    %c0_5 = arith.constant 0 : index
    %7 = vector.load %arg5[%c0_4, %c0_5] : memref<1x8xf32, #tpu.memory_space<vmem>>, vector<1x8xf32>
    %cst = arith.constant dense<0.000000e+00> : vector<8xf32>
    %8 = vector.multi_reduction <add>, %6, %cst [1] : vector<8x32xf32> to vector<8xf32>
    %9 = vector.shape_cast %8 : vector<8xf32> to vector<1x8xf32>
    %10 = arith.addf %7, %9 : vector<1x8xf32>
    %c0_6 = arith.constant 0 : index
    %c0_7 = arith.constant 0 : index
    %11 = vector.load %arg5[%c0_6, %c0_7] : memref<1x8xf32, #tpu.memory_space<vmem>>, vector<1x8xf32>
    tpu.vector_store %arg5[%c0_6, %c0_7], %10 {strides = array<i32>} : memref<1x8xf32, #tpu.memory_space<vmem>>, vector<1x8xf32>,
    return
  }
  func.func @transform_0(%arg0: i32, %arg1: i32) -> (i32, i32) {
    %c0_i32 = arith.constant 0 : i32
    %c0_i32_0 = arith.constant 0 : i32
    %c0_i32_1 = arith.constant 0 : i32
    return %c0_i32, %c0_i32_0 : i32, i32
  }
  func.func @transform_1(%arg0: i32, %arg1: i32) -> (i32, i32) {
    %c0_i32 = arith.constant 0 : i32
    return %arg0, %arg1 : i32, i32
  }
  func.func @transform_2(%arg0: i32, %arg1: i32) -> (i32, i32) {
    %c0_i32 = arith.constant 0 : i32
    %c0_i32_0 = arith.constant 0 : i32
    return %c0_i32, %arg1 : i32, i32
  }
  func.func @transform_3(%arg0: i32, %arg1: i32) -> (i32, i32) {
    %c0_i32 = arith.constant 0 : i32
    %c0_i32_0 = arith.constant 0 : i32
    return %c0_i32, %arg0 : i32, i32
  }
}

</mosaic_0001>

<llo_original>
// kernel: tpu_custom_call.1
$region0: #{tpu_custom_call.1}
  #allocation0 [shape = 'u32[]', space=smem, size = 0x4, offset = 0x4, fixed_abs, tag = 'smem constant byte address 0x4 - core index']
  #allocation1 [shape = 'u32[144,128]{1,0:T(1,128)}', space=vmem, size = 0x12000, scoped, tag = 'internal scratch']
  #allocation2 [shape = 'f32[1,1]{1,0:T(1,128)S(6)}', space=smem, size = 0x200, scoped, tag = 'scoped memory for tpu_custom_call.1']
  %s0 = inlined_call_operand.<no memory space> [shape: f32[1,1], index: 0, kind: input, shape index: {}]
  %s1 = inlined_call_operand.hbm [shape: f32[8,32], index: 1, kind: input, shape index: {}]
  %s2 = inlined_call_operand.vmem [shape: f32[1,32], index: 2, kind: input, shape index: {}]
  %s3 = inlined_call_operand.hbm [shape: f32[1,8], index: 3, kind: output, shape index: {}]
  %s4 = sld [smem:[#allocation0]]
  $region30: #{tpu_custom_call.1} parent=0
    _
  %s6 = ssub.s32 1, %s4
  %s7 = scalar_select 0, %s6, %s4
  %8 = sst [smem:[#allocation2]] %s0
  $region1: #{tpu_custom_call.1} parent=0
    #allocation3 [shape = 'u8[4096]{0}', space=vmem, size = 0x1000, scoped, tag = 'input window, operand 1, single buffered']
    #allocation4 [shape = 's32[1]{0}', space=sflag, size = 0x4, scoped, tag = 'scoped memory for tpu_custom_call.1']
    #allocation5 [shape = 's32[1]{0}', space=sflag, size = 0x4, scoped, tag = 'scoped memory for tpu_custom_call.1']
    #allocation6 [shape = 'u8[512]{0}', space=vmem, size = 0x400, scoped, tag = 'output window, operand 0, single buffered']
    %9 = vsyncpa [#allocation4], 0
    %10 = vsyncpa [#allocation5], 0
    // Predicated region
    $region2: #{tpu_custom_call.1} parent=1 // pred_check
      _
    $region3: #{tpu_custom_call.1} parent=1 // pred_check_branch
      %12 = sbr.rel (0) target = $region5
    $region4: #{tpu_custom_call.1} parent=1 // pred_region
      _
    $region5: #{tpu_custom_call.1} parent=1 // pred_fallthru
      _
    // Predicated region
    $region6: #{tpu_custom_call.1} parent=1 // pred_check
      _
    $region7: #{tpu_custom_call.1} parent=1 // pred_check_branch
      %14 = sbr.rel (0) target = $region9
    $region8: #{tpu_custom_call.1} parent=1 // pred_region
      %s16 = ssub.s32 128, 128
      %17 = vsyncadd [#allocation4], %s16
      %s19 = sshll.u32 [#allocation3], 4
      %s20 = int_to_ptr.vmem [resolvable:$true] %s19
      %22 = dma.hbm_to_vmem [thread:$0]  %s1, 128, %s20, [#allocation4]
    $region9: #{tpu_custom_call.1} parent=1 // pred_fallthru
      _
    // Predicated region
    $region10: #{tpu_custom_call.1} parent=1 // pred_check
      _
    $region11: #{tpu_custom_call.1} parent=1 // pred_check_branch
      %24 = sbr.rel (0) target = $region13
    $region12: #{tpu_custom_call.1} parent=1 // pred_region
      _
    $region13: #{tpu_custom_call.1} parent=1 // pred_fallthru
      _
    // Predicated region
    $region14: #{tpu_custom_call.1} parent=1 // pred_check
      _
    $region15: #{tpu_custom_call.1} parent=1 // pred_check_branch
      %26 = sbr.rel (0) target = $region17
    $region16: #{tpu_custom_call.1} parent=1 // pred_region
      %27 = dma.done [#allocation4], 128
    $region17: #{tpu_custom_call.1} parent=1 // pred_fallthru
      _
    %p28 = scmp.eq.s32.totalorder 0, 0
    // Predicated region
    $region18: #{tpu_custom_call.1} parent=1 // pred_check
      %p29 = pneg %p28
    $region19: #{tpu_custom_call.1} parent=1 // pred_check_branch
      %31 = sbr.rel (%p29) target = $region21
    $region20: #{tpu_custom_call.1} parent=1 // pred_region
      %s32 = sld [smem:[#allocation2]]
      %v33 = vstv %s32
      %vm34 = vcmask 57344
      %35 = vst.msk [vmem:[#allocation6] sm:$0x1] %vm34, %v33
    $region21: #{tpu_custom_call.1} parent=1 // pred_fallthru
      _
    %v36 = vld [vmem:[#allocation3] sm:$0xff]
    %v37 = vld [vmem:[%s2] sm:$0x1]
    %v39 = vlaneseq
    %v40 = vshrl.u32 %v39, 7
    %v41 = vsub.s32 0, %v40
    %v42 = vrot.slane %v37, %v41
    %v44 = vmul.f32 %v36, %v42
    %v45 = vld [vmem:[#allocation6] sm:$0x1]
    %vm46 = vcmask 261120
    %v47 = vsel %vm46, %v44, 0.0
    %48 = vadd.xlane.f32.xlu0 %v47
    %v49 = vpop.xlane.xlu0 %48
    %v51 = vlaneseq
    %v52 = vshrl.u32 %v51, 7
    %v53 = vsub.s32 0, %v52
    %v54 = vrot.slane %v49, %v53
    %v55 = vlaneseq
    %v56 = vshrl.u32 %v55, 7
    %v57 = vsub.s32 1, %v56
    %v58 = vrot.slane %v49, %v57
    %v59 = vlaneseq
    %v60 = vshrl.u32 %v59, 7
    %v61 = vsub.s32 2, %v60
    %v62 = vrot.slane %v49, %v61
    %v63 = vlaneseq
    %v64 = vshrl.u32 %v63, 7
    %v65 = vsub.s32 3, %v64
    %v66 = vrot.slane %v49, %v65
    %v67 = vlaneseq
    %v68 = vshrl.u32 %v67, 7
    %v69 = vsub.s32 4, %v68
    %v70 = vrot.slane %v49, %v69
    %v71 = vlaneseq
    %v72 = vshrl.u32 %v71, 7
    %v73 = vsub.s32 5, %v72
    %v74 = vrot.slane %v49, %v73
    %v75 = vlaneseq
    %v76 = vshrl.u32 %v75, 7
    %v77 = vsub.s32 6, %v76
    %v78 = vrot.slane %v49, %v77
    %v79 = vlaneseq
    %v80 = vshrl.u32 %v79, 7
    %v81 = vsub.s32 7, %v80
    %v82 = vrot.slane %v49, %v81
    %v83 = vcombine.low %v54, %v58
    %v84 = vcombine.low %v62, %v66
    %v85 = vcombine.low %v70, %v74
    %v86 = vcombine.low %v78, %v82
    %v88 = vunpack.c.l.s4 1966171168
    %v89 = vunpack.c.0.s8 %v88
    %v90 = vlaneseq
    %v91 = vshrl.u32 %v90, 7
    %v92 = vsub.s32 %v89, %v91
    %v93 = vrot.slane %v83, %v92
    %v95 = vunpack.c.l.s4 1966171168
    %v96 = vunpack.c.0.s8 %v95
    %v97 = vlaneseq
    %v98 = vshrl.u32 %v97, 7
    %v99 = vsub.s32 %v96, %v98
    %v100 = vrot.slane %v84, %v99
    %v102 = vunpack.c.l.s4 1966171168
    %v103 = vunpack.c.0.s8 %v102
    %v104 = vlaneseq
    %v105 = vshrl.u32 %v104, 7
    %v106 = vsub.s32 %v103, %v105
    %v107 = vrot.slane %v85, %v106
    %v109 = vunpack.c.l.s4 1966171168
    %v110 = vunpack.c.0.s8 %v109
    %v111 = vlaneseq
    %v112 = vshrl.u32 %v111, 7
    %v113 = vsub.s32 %v110, %v112
    %v114 = vrot.slane %v86, %v113
    %v115 = vcombine.low %v93, %v100
    %v116 = vcombine.low %v107, %v114
    %v118 = vunpack.c.l.s4 1966171168
    %v119 = vunpack.c.0.s8 %v118
    %v120 = vlaneseq
    %v121 = vshrl.u32 %v120, 7
    %v122 = vsub.s32 %v119, %v121
    %v123 = vrot.slane %v115, %v122
    %v125 = vunpack.c.l.s4 1966171168
    %v126 = vunpack.c.0.s8 %v125
    %v127 = vlaneseq
    %v128 = vshrl.u32 %v127, 7
    %v129 = vsub.s32 %v126, %v128
    %v130 = vrot.slane %v116, %v129
    %v131 = vcombine.low %v123, %v130
    %132 = vset.pattern.permute.xlu0 0
    %133 = vperm.xlu0 %132, %v131
    %v134 = vpop.permute.xlu0 %133
    %v135 = vlaneseq
    %v136 = vand.u32 %v135, 127
    %v137 = vlaneseq
    %v138 = vshrl.u32 %v137, 7
    %v139 = vsub.s32 %v136, %v138
    %v140 = vrot.slane %v134, %v139
    %v142 = vunpack.c.l.s4 1966171168
    %v143 = vunpack.c.0.s8 %v142
    %v144 = vlaneseq
    %v145 = vshrl.u32 %v144, 7
    %v146 = vsub.s32 %v143, %v145
    %v147 = vrot.slane %v140, %v146
    %v149 = vunpack.c.l.s4 1966171168
    %v150 = vunpack.c.0.s8 %v149
    %v151 = vlaneseq
    %v152 = vshrl.u32 %v151, 7
    %v153 = vsub.s32 %v150, %v152
    %v154 = vrot.slane %v147, %v153
    %v156 = vadd.f32 %v45, %v154
    %vm157 = vcmask 57344
    %158 = vst.msk [vmem:[#allocation6] sm:$0x1] %vm157, %v156
    // Predicated region
    $region22: #{tpu_custom_call.1} parent=1 // pred_check
      _
    $region23: #{tpu_custom_call.1} parent=1 // pred_check_branch
      %160 = sbr.rel (0) target = $region25
    $region24: #{tpu_custom_call.1} parent=1 // pred_region
      %s162 = ssub.s32 16, 16
      %163 = vsyncadd [#allocation5], %s162
      %s165 = sshll.u32 [#allocation6], 4
      %s166 = int_to_ptr.vmem [resolvable:$true] %s165
      %168 = dma.vmem_to_hbm [thread:$0]  %s166, 16, %s3, [#allocation5]
    $region25: #{tpu_custom_call.1} parent=1 // pred_fallthru
      _
    // Predicated region
    $region26: #{tpu_custom_call.1} parent=1 // pred_check
      _
    $region27: #{tpu_custom_call.1} parent=1 // pred_check_branch
      %170 = sbr.rel (0) target = $region29
    $region28: #{tpu_custom_call.1} parent=1 // pred_region
      %171 = dma.done [#allocation5], 16
    $region29: #{tpu_custom_call.1} parent=1 // pred_fallthru
      _
    %172 = vsyncpa [#allocation4], 1
    %173 = vsyncpa [#allocation5], 1

</llo_original>
